<compile_context>
chip_gen: v7x
topology: tpu7x:2x2x1
jax: 0.10.0
libtpu: 0.0.40
codegen_flags: <defaults>
</compile_context>

<pallas_src>
import functools

import jax
import jax.numpy as jnp
from jax.experimental import pallas as pl
from jax.experimental.pallas import tpu as pltpu

_LANE = 128          # lane width (last-dim tiling unit)
_LEAKY_SLOPE = 0.01  # nn.LeakyReLU() default negative_slope


def _leaky_relu(x, slope=_LEAKY_SLOPE):
    return jnp.where(x > 0, x, slope * x)


def mlp_kernel(xt_ref, w1_ref, b1_ref, w2_ref, b2_ref, w3_ref, b3_ref, ot_ref):
    xt = xt_ref[...]                                                    # (Din, tb)  batch on lanes
    h1 = jnp.dot(w1_ref[...], xt, preferred_element_type=jnp.float32) + b1_ref[...]
    h1 = _leaky_relu(h1)                                                # (H1, tb)
    h2 = jnp.dot(w2_ref[...], h1, preferred_element_type=jnp.float32) + b2_ref[...]
    h2 = _leaky_relu(h2)                                                # (H2, tb)
    yt = jnp.dot(w3_ref[...], h2, preferred_element_type=jnp.float32) + b3_ref[...]
    ot_ref[...] = yt.astype(ot_ref.dtype)                               # (Dout, tb) lane-dense store


@functools.partial(jax.jit, static_argnames=("max_tile",))
def nn_forward(x, params, *, max_tile=1024):
    """Fused 3-layer MLP forward.  x: (B, 6); params in PyTorch layout."""
    w1, b1, w2, b2, w3, b3 = params
    B, Din = x.shape
    H1 = w1.shape[0]
    H2 = w2.shape[0]
    Dout = w3.shape[0]

    # Lane (batch) tile: multiple of 128; whole padded batch for small B
    # (single-step grid), capped at `max_tile` for large B so there are >= 2
    # parallel grid steps (v7x has 2 TensorCores; v5e/v6e just minimize steps).
    tb = min(max_tile, max(_LANE, pl.cdiv(B, _LANE) * _LANE))
    Bp = pl.cdiv(B, tb) * tb
    grid = (Bp // tb,)

    # Zero-pad the batch to the tile and transpose to batch-on-lanes.
    xt = jnp.pad(x, ((0, Bp - B), (0, 0))).T                            # (Din, Bp)

    full = lambda shape: pl.BlockSpec(shape, lambda i: (0, 0))

    yt = pl.pallas_call(
        mlp_kernel,
        out_shape=jax.ShapeDtypeStruct((Dout, Bp), x.dtype),
        grid_spec=pltpu.PrefetchScalarGridSpec(
            num_scalar_prefetch=0,
            grid=grid,
            in_specs=[
                pl.BlockSpec((Din, tb), lambda i: (0, i)),
                full((H1, Din)), full((H1, 1)),
                full((H2, H1)), full((H2, 1)),
                full((Dout, H2)), full((Dout, 1)),
            ],
            out_specs=pl.BlockSpec((Dout, tb), lambda i: (0, i)),
        ),
        compiler_params=pltpu.CompilerParams(
            dimension_semantics=("parallel",),
        ),
    )(xt, w1, b1, w2, b2, w3, b3)

    return yt[:, :B].T                                                  # (B, Dout)


def init_params(key, scale=1, init_q=None, dtype=jnp.float32):
    """Deterministic synthetic init matching nn.Linear.

    Weights are stored in PyTorch layout (out_features, in_features); biases as
    (out_features, 1).  If init_q is given, layer3.weight = 0, layer3.bias = init_q.
    """
    dims = [(6, 32 * scale), (32 * scale, 16), (16, 9)]
    keys = jax.random.split(key, 6)
    params = []
    for idx, (fan_in, fan_out) in enumerate(dims):
        bound = 1.0 / float(fan_in) ** 0.5
        w = jax.random.uniform(keys[2 * idx], (fan_out, fan_in), dtype,
                               minval=-bound, maxval=bound)
        b = jax.random.uniform(keys[2 * idx + 1], (fan_out, 1), dtype,
                               minval=-bound, maxval=bound)
        params.extend([w, b])
    if init_q is not None:
        params[4] = jnp.zeros_like(params[4])            # layer3.weight <- 0
        params[5] = jnp.full_like(params[5], init_q)     # layer3.bias   <- init_q
    return tuple(params)


def nn_forward_ref(x, params):
    w1, b1, w2, b2, w3, b3 = params
    h = _leaky_relu(x @ w1.T + b1.T)
    h = _leaky_relu(h @ w2.T + b2.T)
    return h @ w3.T + b3.T


if __name__ == "__main__":
    key = jax.random.PRNGKey(0)
    kx, kp, kx2 = jax.random.split(key, 3)

    params = init_params(kp, scale=1, init_q=None)

    # Small batch (forward implies 6 input features): single-step grid, whole
    # problem resident in VMEM.
    B = 16
    x = jax.random.normal(kx, (B, 6), jnp.float32)
    out = jax.block_until_ready(nn_forward(x, params))
    ref = nn_forward_ref(x, params)
    assert out.shape == (B, 9)
    assert jnp.allclose(out, ref, atol=1e-4, rtol=1e-4), float(jnp.abs(out - ref).max())

    # Larger, non-aligned batch: exercises zero-padding + multi-step parallel grid.
    B2 = 2304
    x2 = jax.random.normal(kx2, (B2, 6), jnp.float32)
    out2 = jax.block_until_ready(nn_forward(x2, params))
    ref2 = nn_forward_ref(x2, params)
    assert out2.shape == (B2, 9)
    assert jnp.allclose(out2, ref2, atol=1e-4, rtol=1e-4), float(jnp.abs(out2 - ref2).max())

    print("KERNEL_OK")
</pallas_src>

<mosaic_0001>
module attributes {stable_mosaic.version = 11 : i64} {
  func.func @mlp_kernel(%arg0: i32, %arg1: memref<6x128xf32, #tpu.memory_space<vmem>>, %arg2: memref<32x6xf32, #tpu.memory_space<vmem>>, %arg3: memref<32x1xf32, #tpu.memory_space<vmem>>, %arg4: memref<16x32xf32, #tpu.memory_space<vmem>>, %arg5: memref<16x1xf32, #tpu.memory_space<vmem>>, %arg6: memref<9x16xf32, #tpu.memory_space<vmem>>, %arg7: memref<9x1xf32, #tpu.memory_space<vmem>>, %arg8: memref<9x128xf32, #tpu.memory_space<vmem>>) attributes {dimension_semantics = [#tpu.dimension_semantics<parallel>], iteration_bounds = array<i64: 1>, scalar_prefetch = 0 : i64, scratch_operands = 0 : i64, tpu.core_type = #tpu.core_type<tc>, window_params = [{transform_indices = @transform_0, window_bounds = array<i64: 6, 128>}, {pipeline_mode = #tpu.pipeline_mode<synchronous>, transform_indices = @transform_1, window_bounds = array<i64: 32, 6>}, {pipeline_mode = #tpu.pipeline_mode<synchronous>, transform_indices = @transform_2, window_bounds = array<i64: 32, 1>}, {pipeline_mode = #tpu.pipeline_mode<synchronous>, transform_indices = @transform_3, window_bounds = array<i64: 16, 32>}, {pipeline_mode = #tpu.pipeline_mode<synchronous>, transform_indices = @transform_4, window_bounds = array<i64: 16, 1>}, {pipeline_mode = #tpu.pipeline_mode<synchronous>, transform_indices = @transform_5, window_bounds = array<i64: 9, 16>}, {pipeline_mode = #tpu.pipeline_mode<synchronous>, transform_indices = @transform_6, window_bounds = array<i64: 9, 1>}, {transform_indices = @transform_7, window_bounds = array<i64: 9, 128>}]} {
    %c0 = arith.constant 0 : index
    %c0_0 = arith.constant 0 : index
    %0 = vector.load %arg1[%c0, %c0_0] : memref<6x128xf32, #tpu.memory_space<vmem>>, vector<6x128xf32>
    %c0_1 = arith.constant 0 : index
    %c0_2 = arith.constant 0 : index
    %1 = vector.load %arg2[%c0_1, %c0_2] : memref<32x6xf32, #tpu.memory_space<vmem>>, vector<32x6xf32>
    %cst = arith.constant dense<0.000000e+00> : vector<32x128xf32>
    %2 = tpu.matmul %1, %0, %cst {dimension_numbers = #tpu.dot_dimension_numbers<[1], [0], [0], [1], [0, 0, 1, 1], [], []>} : vector<32x6xf32>, vector<6x128xf32>, vector<32x128xf32> -> vector<32x128xf32>
    %c0_3 = arith.constant 0 : index
    %c0_4 = arith.constant 0 : index
    %3 = vector.load %arg3[%c0_3, %c0_4] : memref<32x1xf32, #tpu.memory_space<vmem>>, vector<32x1xf32>
    %4 = vector.broadcast %3 : vector<32x1xf32> to vector<32x128xf32>
    %5 = arith.addf %2, %4 : vector<32x128xf32>
    %cst_5 = arith.constant 0.000000e+00 : f32
    %6 = vector.broadcast %cst_5 : f32 to vector<32x128xf32>
    %7 = arith.cmpf ogt, %5, %6 : vector<32x128xf32>
    %cst_6 = arith.constant 0.00999999977 : f32
    %8 = vector.broadcast %cst_6 : f32 to vector<32x128xf32>
    %9 = arith.mulf %8, %5 : vector<32x128xf32>
    %10 = arith.select %7, %5, %9 : vector<32x128xi1>, vector<32x128xf32>
    %c0_7 = arith.constant 0 : index
    %c0_8 = arith.constant 0 : index
    %11 = vector.load %arg4[%c0_7, %c0_8] : memref<16x32xf32, #tpu.memory_space<vmem>>, vector<16x32xf32>
    %cst_9 = arith.constant dense<0.000000e+00> : vector<16x128xf32>
    %12 = tpu.matmul %11, %10, %cst_9 {dimension_numbers = #tpu.dot_dimension_numbers<[1], [0], [0], [1], [0, 0, 1, 1], [], []>} : vector<16x32xf32>, vector<32x128xf32>, vector<16x128xf32> -> vector<16x128xf32>
    %c0_10 = arith.constant 0 : index
    %c0_11 = arith.constant 0 : index
    %13 = vector.load %arg5[%c0_10, %c0_11] : memref<16x1xf32, #tpu.memory_space<vmem>>, vector<16x1xf32>
    %14 = vector.broadcast %13 : vector<16x1xf32> to vector<16x128xf32>
    %15 = arith.addf %12, %14 : vector<16x128xf32>
    %cst_12 = arith.constant 0.000000e+00 : f32
    %16 = vector.broadcast %cst_12 : f32 to vector<16x128xf32>
    %17 = arith.cmpf ogt, %15, %16 : vector<16x128xf32>
    %cst_13 = arith.constant 0.00999999977 : f32
    %18 = vector.broadcast %cst_13 : f32 to vector<16x128xf32>
    %19 = arith.mulf %18, %15 : vector<16x128xf32>
    %20 = arith.select %17, %15, %19 : vector<16x128xi1>, vector<16x128xf32>
    %c0_14 = arith.constant 0 : index
    %c0_15 = arith.constant 0 : index
    %21 = vector.load %arg6[%c0_14, %c0_15] : memref<9x16xf32, #tpu.memory_space<vmem>>, vector<9x16xf32>
    %cst_16 = arith.constant dense<0.000000e+00> : vector<9x128xf32>
    %22 = tpu.matmul %21, %20, %cst_16 {dimension_numbers = #tpu.dot_dimension_numbers<[1], [0], [0], [1], [0, 0, 1, 1], [], []>} : vector<9x16xf32>, vector<16x128xf32>, vector<9x128xf32> -> vector<9x128xf32>
    %c0_17 = arith.constant 0 : index
    %c0_18 = arith.constant 0 : index
    %23 = vector.load %arg7[%c0_17, %c0_18] : memref<9x1xf32, #tpu.memory_space<vmem>>, vector<9x1xf32>
    %24 = vector.broadcast %23 : vector<9x1xf32> to vector<9x128xf32>
    %25 = arith.addf %22, %24 : vector<9x128xf32>
    %c0_19 = arith.constant 0 : index
    %c0_20 = arith.constant 0 : index
    %26 = vector.load %arg8[%c0_19, %c0_20] : memref<9x128xf32, #tpu.memory_space<vmem>>, vector<9x128xf32>
    tpu.vector_store %arg8[%c0_19, %c0_20], %25 {strides = array<i32>} : memref<9x128xf32, #tpu.memory_space<vmem>>, vector<9x128xf32>,
    return
  }
  func.func @transform_0(%arg0: i32) -> (i32, i32) {
    %c0_i32 = arith.constant 0 : i32
    %c0_i32_0 = arith.constant 0 : i32
    return %c0_i32, %arg0 : i32, i32
  }
  func.func @transform_1(%arg0: i32) -> (i32, i32) {
    %c0_i32 = arith.constant 0 : i32
    %c0_i32_0 = arith.constant 0 : i32
    %c0_i32_1 = arith.constant 0 : i32
    return %c0_i32, %c0_i32_0 : i32, i32
  }
  func.func @transform_2(%arg0: i32) -> (i32, i32) {
    %c0_i32 = arith.constant 0 : i32
    %c0_i32_0 = arith.constant 0 : i32
    %c0_i32_1 = arith.constant 0 : i32
    return %c0_i32, %c0_i32_0 : i32, i32
  }
  func.func @transform_3(%arg0: i32) -> (i32, i32) {
    %c0_i32 = arith.constant 0 : i32
    %c0_i32_0 = arith.constant 0 : i32
    %c0_i32_1 = arith.constant 0 : i32
    return %c0_i32, %c0_i32_0 : i32, i32
  }
  func.func @transform_4(%arg0: i32) -> (i32, i32) {
    %c0_i32 = arith.constant 0 : i32
    %c0_i32_0 = arith.constant 0 : i32
    %c0_i32_1 = arith.constant 0 : i32
    return %c0_i32, %c0_i32_0 : i32, i32
  }
  func.func @transform_5(%arg0: i32) -> (i32, i32) {
    %c0_i32 = arith.constant 0 : i32
    %c0_i32_0 = arith.constant 0 : i32
    %c0_i32_1 = arith.constant 0 : i32
    return %c0_i32, %c0_i32_0 : i32, i32
  }
  func.func @transform_6(%arg0: i32) -> (i32, i32) {
    %c0_i32 = arith.constant 0 : i32
    %c0_i32_0 = arith.constant 0 : i32
    %c0_i32_1 = arith.constant 0 : i32
    return %c0_i32, %c0_i32_0 : i32, i32
  }
  func.func @transform_7(%arg0: i32) -> (i32, i32) {
    %c0_i32 = arith.constant 0 : i32
    %c0_i32_0 = arith.constant 0 : i32
    return %c0_i32, %arg0 : i32, i32
  }
}

</mosaic_0001>

<llo_original>
// kernel: nn_forward.1
$region0: #{nn_forward.1}
  #allocation0 [shape = 'u32[]', space=smem, size = 0x4, offset = 0x4, fixed_abs, tag = 'smem constant byte address 0x4 - core index']
  #allocation1 [shape = 'u32[144,128]{1,0:T(1,128)}', space=vmem, size = 0x12000, scoped, tag = 'internal scratch']
  %s0 = inlined_call_operand.vmem [shape: f32[6,128], index: 0, kind: input, shape index: {}]
  %s1 = inlined_call_operand.vmem [shape: f32[32,6], index: 1, kind: input, shape index: {}]
  %s2 = inlined_call_operand.vmem [shape: f32[32,1], index: 2, kind: input, shape index: {}]
  %s3 = inlined_call_operand.vmem [shape: f32[16,32], index: 3, kind: input, shape index: {}]
  %s4 = inlined_call_operand.vmem [shape: f32[16,1], index: 4, kind: input, shape index: {}]
  %s5 = inlined_call_operand.vmem [shape: f32[9,16], index: 5, kind: input, shape index: {}]
  %s6 = inlined_call_operand.vmem [shape: f32[9,1], index: 6, kind: input, shape index: {}]
  %s7 = inlined_call_operand.vmem [shape: f32[9,128], index: 7, kind: output, shape index: {}]
  %s8 = sld [smem:[#allocation0]]
  $region38: #{nn_forward.1} parent=0
    _
  %s10 = ssub.s32 1, %s8
  %s11 = scalar_select 0, %s10, %s8
  // Predicated region
  $region2: #{nn_forward.1} parent=0 // pred_check
    _
  $region3: #{nn_forward.1} parent=0 // pred_check_branch
    %13 = sbr.rel (0) target = $region5
  $region4: #{nn_forward.1} parent=0 // pred_region
    _
  $region5: #{nn_forward.1} parent=0 // pred_fallthru
    _
  // Predicated region
  $region6: #{nn_forward.1} parent=0 // pred_check
    _
  $region7: #{nn_forward.1} parent=0 // pred_check_branch
    %15 = sbr.rel (0) target = $region9
  $region8: #{nn_forward.1} parent=0 // pred_region
    _
  $region9: #{nn_forward.1} parent=0 // pred_fallthru
    _
  // Predicated region
  $region10: #{nn_forward.1} parent=0 // pred_check
    _
  $region11: #{nn_forward.1} parent=0 // pred_check_branch
    %17 = sbr.rel (0) target = $region13
  $region12: #{nn_forward.1} parent=0 // pred_region
    _
  $region13: #{nn_forward.1} parent=0 // pred_fallthru
    _
  // Predicated region
  $region14: #{nn_forward.1} parent=0 // pred_check
    _
  $region15: #{nn_forward.1} parent=0 // pred_check_branch
    %19 = sbr.rel (0) target = $region17
  $region16: #{nn_forward.1} parent=0 // pred_region
    _
  $region17: #{nn_forward.1} parent=0 // pred_fallthru
    _
  // Predicated region
  $region18: #{nn_forward.1} parent=0 // pred_check
    _
  $region19: #{nn_forward.1} parent=0 // pred_check_branch
    %21 = sbr.rel (0) target = $region21
  $region20: #{nn_forward.1} parent=0 // pred_region
    _
  $region21: #{nn_forward.1} parent=0 // pred_fallthru
    _
  // Predicated region
  $region22: #{nn_forward.1} parent=0 // pred_check
    _
  $region23: #{nn_forward.1} parent=0 // pred_check_branch
    %23 = sbr.rel (0) target = $region25
  $region24: #{nn_forward.1} parent=0 // pred_region
    _
  $region25: #{nn_forward.1} parent=0 // pred_fallthru
    _
  // Predicated region
  $region26: #{nn_forward.1} parent=0 // pred_check
    _
  $region27: #{nn_forward.1} parent=0 // pred_check_branch
    %25 = sbr.rel (0) target = $region29
  $region28: #{nn_forward.1} parent=0 // pred_region
    _
  $region29: #{nn_forward.1} parent=0 // pred_fallthru
    _
  %v26 = vld [vmem:[%s0] sm:$0x3f]
  %v27 = vld [vmem:[%s1] sm:$0xff]
  %v28 = vld [vmem:[%s1 + $0x8] sm:$0xff]
  %v29 = vld [vmem:[%s1 + $0x10] sm:$0xff]
  %v30 = vld [vmem:[%s1 + $0x18] sm:$0xff]
  %v31 = vld [vmem:[%s2] sm:$0xff]
  %v32 = vld [vmem:[%s2 + $0x8] sm:$0xff]
  %v33 = vld [vmem:[%s2 + $0x10] sm:$0xff]
  %v34 = vld [vmem:[%s2 + $0x18] sm:$0xff]
  %36 = vset.pattern.permute.xlu0 0
  %37 = vperm.xlu0 %36, %v31
  %v38 = vpop.permute.xlu0 %37
  %41 = vset.pattern.permute.xlu0 0
  %42 = vperm.xlu0 %41, %v32
  %v43 = vpop.permute.xlu0 %42
  %46 = vset.pattern.permute.xlu0 0
  %47 = vperm.xlu0 %46, %v33
  %v48 = vpop.permute.xlu0 %47
  %51 = vset.pattern.permute.xlu0 0
  %52 = vperm.xlu0 %51, %v34
  %v53 = vpop.permute.xlu0 %52
  %vm55 = vcmask 48128
  %v57 = vsel %vm55, %v27, 0
  %v60 = vsel %vm55, %v28, 0
  %v63 = vsel %vm55, %v29, 0
  %v66 = vsel %vm55, %v30, 0
  %vm68 = vcmask 1045504
  %v70 = vsel %vm68, %v26, 0
  %72 = vmatprep.subr.mxu0 0.0
  %73 = vmatpush1.msra.mxu0 %v70
  %74 = vmatprep.subr.mxu0 0.0
  %75 = vmatpush1.msra.mxu0 0.0
  %76 = vmatprep.subr.mxu0 0.0
  %77 = vmatpush1.msra.mxu0 0.0
  %78 = vmatprep.subr.mxu0 0.0
  %79 = vmatpush1.msra.mxu0 0.0
  %80 = vmatprep.subr.mxu0 0.0
  %81 = vmatpush1.msra.mxu0 0.0
  %82 = vmatprep.subr.mxu0 0.0
  %83 = vmatpush1.msra.mxu0 0.0
  %84 = vmatprep.subr.mxu0 0.0
  %85 = vmatpush1.msra.mxu0 0.0
  %86 = vmatprep.subr.mxu0 0.0
  %87 = vmatpush1.msra.mxu0 0.0
  %88 = vmatprep.subr.mxu0 0.0
  %89 = vmatpush1.msra.mxu0 0.0
  %90 = vmatprep.subr.mxu0 0.0
  %91 = vmatpush1.msra.mxu0 0.0
  %92 = vmatprep.subr.mxu0 0.0
  %93 = vmatpush1.msra.mxu0 0.0
  %94 = vmatprep.subr.mxu0 0.0
  %95 = vmatpush1.msra.mxu0 0.0
  %96 = vmatprep.subr.mxu0 0.0
  %97 = vmatpush1.msra.mxu0 0.0
  %98 = vmatprep.subr.mxu0 0.0
  %99 = vmatpush1.msra.mxu0 0.0
  %100 = vmatprep.subr.mxu0 0.0
  %101 = vmatpush1.msra.mxu0 0.0
  %102 = vmatprep.subr.mxu0 0.0
  %103 = vmatpush1.msra.mxu0 0.0
  %104 = vmatprep.subr.mxu0 0.0
  %105 = vmatpush1.msra.mxu0 0.0
  %106 = vmatprep.subr.mxu0 0.0
  %107 = vmatpush1.msra.mxu0 0.0
  %108 = vmatprep.subr.mxu0 0.0
  %109 = vmatpush1.msra.mxu0 0.0
  %110 = vmatprep.subr.mxu0 0.0
  %111 = vmatpush1.msra.mxu0 0.0
  %112 = vmatprep.subr.mxu0 0.0
  %113 = vmatpush1.msra.mxu0 0.0
  %114 = vmatprep.subr.mxu0 0.0
  %115 = vmatpush1.msra.mxu0 0.0
  %116 = vmatprep.subr.mxu0 0.0
  %117 = vmatpush1.msra.mxu0 0.0
  %118 = vmatprep.subr.mxu0 0.0
  %119 = vmatpush1.msra.mxu0 0.0
  %120 = vmatprep.subr.mxu0 0.0
  %121 = vmatpush1.msra.mxu0 0.0
  %122 = vmatprep.subr.mxu0 0.0
  %123 = vmatpush1.msra.mxu0 0.0
  %124 = vmatprep.subr.mxu0 0.0
  %125 = vmatpush1.msra.mxu0 0.0
  %126 = vmatprep.subr.mxu0 0.0
  %127 = vmatpush1.msra.mxu0 0.0
  %128 = vmatprep.subr.mxu0 0.0
  %129 = vmatpush1.msra.mxu0 0.0
  %130 = vmatprep.subr.mxu0 0.0
  %131 = vmatpush1.msra.mxu0 0.0
  %132 = vmatprep.subr.mxu0 0.0
  %133 = vmatpush1.msra.mxu0 0.0
  %134 = vmatprep.subr.mxu0 0.0
  %135 = vmatpush1.msra.mxu0 0.0
  %136 = vmatprep.mubr.f32.mxu0 0.0
  %137 = vmatmul.mubr.f32.gmra.mrb[0].mxu0 %v57
  %v138 = vpop.f32.mrb[0].mxu0
  %v139 = vadd.f32 %v38, %v138
  %v140 = vpop.f32.mrb[0].mxu0
  %141 = vmatprep.mubr.f32.mxu0 0.0
  %142 = vmatmul.mubr.f32.gmra.mrb[0].mxu0 %v60
  %v143 = vpop.f32.mrb[0].mxu0
  %v144 = vadd.f32 %v43, %v143
  %v145 = vpop.f32.mrb[0].mxu0
  %146 = vmatprep.mubr.f32.mxu0 0.0
  %147 = vmatmul.mubr.f32.gmra.mrb[0].mxu0 %v63
  %v148 = vpop.f32.mrb[0].mxu0
  %v149 = vadd.f32 %v48, %v148
  %v150 = vpop.f32.mrb[0].mxu0
  %151 = vmatprep.mubr.f32.mxu0 0.0
  %152 = vmatmul.mubr.f32.gmra.mrb[0].mxu0 %v66
  %v153 = vpop.f32.mrb[0].mxu0
  %v154 = vadd.f32 %v53, %v153
  %v155 = vpop.f32.mrb[0].mxu0
  %156 = vdwg.mxu0
  %vm157 = vcmp.gt.f32.partialorder %v139, 0.0
  %vm158 = vcmp.gt.f32.partialorder %v144, 0.0
  %vm159 = vcmp.gt.f32.partialorder %v149, 0.0
  %vm160 = vcmp.gt.f32.partialorder %v154, 0.0
  %v161 = vmul.f32 %v139, 0.01
  %v162 = vmul.f32 %v144, 0.01
  %v163 = vmul.f32 %v149, 0.01
  %v164 = vmul.f32 %v154, 0.01
  %v165 = vsel %vm157, %v139, %v161
  %v166 = vsel %vm158, %v144, %v162
  %v167 = vsel %vm159, %v149, %v163
  %v168 = vsel %vm160, %v154, %v164
  %v169 = vld [vmem:[%s3] sm:$0xff]
  %v170 = vld [vmem:[%s3 + $0x8] sm:$0xff]
  %v171 = vld [vmem:[%s4] sm:$0xff]
  %v172 = vld [vmem:[%s4 + $0x8] sm:$0xff]
  %174 = vset.pattern.permute.xlu0 0
  %175 = vperm.xlu0 %174, %v171
  %v176 = vpop.permute.xlu0 %175
  %179 = vset.pattern.permute.xlu0 0
  %180 = vperm.xlu0 %179, %v172
  %v181 = vpop.permute.xlu0 %180
  %vm183 = vcmask 261120
  %v185 = vsel %vm183, %v169, 0
  %v188 = vsel %vm183, %v170, 0
  %190 = vmatprep.subr.mxu0 0.0
  %191 = vmatpush1.msra.mxu0 %v165
  %192 = vmatprep.subr.mxu0 0.0
  %193 = vmatpush1.msra.mxu0 %v166
  %194 = vmatprep.subr.mxu0 0.0
  %195 = vmatpush1.msra.mxu0 %v167
  %196 = vmatprep.subr.mxu0 0.0
  %197 = vmatpush1.msra.mxu0 %v168
  %198 = vmatprep.subr.mxu0 0.0
  %199 = vmatpush1.msra.mxu0 0.0
  %200 = vmatprep.subr.mxu0 0.0
  %201 = vmatpush1.msra.mxu0 0.0
  %202 = vmatprep.subr.mxu0 0.0
  %203 = vmatpush1.msra.mxu0 0.0
  %204 = vmatprep.subr.mxu0 0.0
  %205 = vmatpush1.msra.mxu0 0.0
  %206 = vmatprep.subr.mxu0 0.0
  %207 = vmatpush1.msra.mxu0 0.0
  %208 = vmatprep.subr.mxu0 0.0
  %209 = vmatpush1.msra.mxu0 0.0
  %210 = vmatprep.subr.mxu0 0.0
  %211 = vmatpush1.msra.mxu0 0.0
  %212 = vmatprep.subr.mxu0 0.0
  %213 = vmatpush1.msra.mxu0 0.0
  %214 = vmatprep.subr.mxu0 0.0
  %215 = vmatpush1.msra.mxu0 0.0
  %216 = vmatprep.subr.mxu0 0.0
  %217 = vmatpush1.msra.mxu0 0.0
  %218 = vmatprep.subr.mxu0 0.0
  %219 = vmatpush1.msra.mxu0 0.0
  %220 = vmatprep.subr.mxu0 0.0
  %221 = vmatpush1.msra.mxu0 0.0
  %222 = vmatprep.subr.mxu0 0.0
  %223 = vmatpush1.msra.mxu0 0.0
  %224 = vmatprep.subr.mxu0 0.0
  %225 = vmatpush1.msra.mxu0 0.0
  %226 = vmatprep.subr.mxu0 0.0
  %227 = vmatpush1.msra.mxu0 0.0
  %228 = vmatprep.subr.mxu0 0.0
  %229 = vmatpush1.msra.mxu0 0.0
  %230 = vmatprep.subr.mxu0 0.0
  %231 = vmatpush1.msra.mxu0 0.0
  %232 = vmatprep.subr.mxu0 0.0
  %233 = vmatpush1.msra.mxu0 0.0
  %234 = vmatprep.subr.mxu0 0.0
  %235 = vmatpush1.msra.mxu0 0.0
  %236 = vmatprep.subr.mxu0 0.0
  %237 = vmatpush1.msra.mxu0 0.0
  %238 = vmatprep.subr.mxu0 0.0
  %239 = vmatpush1.msra.mxu0 0.0
  %240 = vmatprep.subr.mxu0 0.0
  %241 = vmatpush1.msra.mxu0 0.0
  %242 = vmatprep.subr.mxu0 0.0
  %243 = vmatpush1.msra.mxu0 0.0
  %244 = vmatprep.subr.mxu0 0.0
  %245 = vmatpush1.msra.mxu0 0.0
  %246 = vmatprep.subr.mxu0 0.0
  %247 = vmatpush1.msra.mxu0 0.0
  %248 = vmatprep.subr.mxu0 0.0
  %249 = vmatpush1.msra.mxu0 0.0
  %250 = vmatprep.subr.mxu0 0.0
  %251 = vmatpush1.msra.mxu0 0.0
  %252 = vmatprep.subr.mxu0 0.0
  %253 = vmatpush1.msra.mxu0 0.0
  %254 = vmatprep.mubr.f32.mxu0 0.0
  %255 = vmatmul.mubr.f32.gmra.mrb[0].mxu0 %v185
  %v256 = vpop.f32.mrb[0].mxu0
  %v257 = vadd.f32 %v176, %v256
  %v258 = vpop.f32.mrb[0].mxu0
  %259 = vmatprep.mubr.f32.mxu0 0.0
  %260 = vmatmul.mubr.f32.gmra.mrb[0].mxu0 %v188
  %v261 = vpop.f32.mrb[0].mxu0
  %v262 = vadd.f32 %v181, %v261
  %v263 = vpop.f32.mrb[0].mxu0
  %264 = vdwg.mxu0
  %vm265 = vcmp.gt.f32.partialorder %v257, 0.0
  %vm266 = vcmp.gt.f32.partialorder %v262, 0.0
  %v267 = vmul.f32 %v257, 0.01
  %v268 = vmul.f32 %v262, 0.01
  %v269 = vsel %vm265, %v257, %v267
  %v270 = vsel %vm266, %v262, %v268
  %v271 = vld [vmem:[%s5] sm:$0xff]
  %v272 = vld [vmem:[%s5 + $0x8] sm:$0x1]
  %v273 = vld [vmem:[%s6] sm:$0xff]
  %v274 = vld [vmem:[%s6 + $0x8] sm:$0x1]
  %276 = vset.pattern.permute.xlu0 0
  %277 = vperm.xlu0 %276, %v273
  %v278 = vpop.permute.xlu0 %277
  %281 = vset.pattern.permute.xlu0 0
  %282 = vperm.xlu0 %281, %v274
  %v283 = vpop.permute.xlu0 %282
  %vm285 = vcmask 130048
  %v287 = vsel %vm285, %v271, 0
  %v290 = vsel %vm285, %v272, 0
  %292 = vmatprep.subr.mxu0 0.0
  %293 = vmatpush1.msra.mxu0 %v269
  %294 = vmatprep.subr.mxu0 0.0
  %295 = vmatpush1.msra.mxu0 %v270
  %296 = vmatprep.subr.mxu0 0.0
  %297 = vmatpush1.msra.mxu0 0.0
  %298 = vmatprep.subr.mxu0 0.0
  %299 = vmatpush1.msra.mxu0 0.0
  %300 = vmatprep.subr.mxu0 0.0
  %301 = vmatpush1.msra.mxu0 0.0
  %302 = vmatprep.subr.mxu0 0.0
  %303 = vmatpush1.msra.mxu0 0.0
  %304 = vmatprep.subr.mxu0 0.0
  %305 = vmatpush1.msra.mxu0 0.0
  %306 = vmatprep.subr.mxu0 0.0
  %307 = vmatpush1.msra.mxu0 0.0
  %308 = vmatprep.subr.mxu0 0.0
  %309 = vmatpush1.msra.mxu0 0.0
  %310 = vmatprep.subr.mxu0 0.0
  %311 = vmatpush1.msra.mxu0 0.0
  %312 = vmatprep.subr.mxu0 0.0
  %313 = vmatpush1.msra.mxu0 0.0
  %314 = vmatprep.subr.mxu0 0.0
  %315 = vmatpush1.msra.mxu0 0.0
  %316 = vmatprep.subr.mxu0 0.0
  %317 = vmatpush1.msra.mxu0 0.0
  %318 = vmatprep.subr.mxu0 0.0
  %319 = vmatpush1.msra.mxu0 0.0
  %320 = vmatprep.subr.mxu0 0.0
  %321 = vmatpush1.msra.mxu0 0.0
  %322 = vmatprep.subr.mxu0 0.0
  %323 = vmatpush1.msra.mxu0 0.0
  %324 = vmatprep.subr.mxu0 0.0
  %325 = vmatpush1.msra.mxu0 0.0
  %326 = vmatprep.subr.mxu0 0.0
  %327 = vmatpush1.msra.mxu0 0.0
  %328 = vmatprep.subr.mxu0 0.0
  %329 = vmatpush1.msra.mxu0 0.0
  %330 = vmatprep.subr.mxu0 0.0
  %331 = vmatpush1.msra.mxu0 0.0
  %332 = vmatprep.subr.mxu0 0.0
  %333 = vmatpush1.msra.mxu0 0.0
  %334 = vmatprep.subr.mxu0 0.0
  %335 = vmatpush1.msra.mxu0 0.0
  %336 = vmatprep.subr.mxu0 0.0
  %337 = vmatpush1.msra.mxu0 0.0
  %338 = vmatprep.subr.mxu0 0.0
  %339 = vmatpush1.msra.mxu0 0.0
  %340 = vmatprep.subr.mxu0 0.0
  %341 = vmatpush1.msra.mxu0 0.0
  %342 = vmatprep.subr.mxu0 0.0
  %343 = vmatpush1.msra.mxu0 0.0
  %344 = vmatprep.subr.mxu0 0.0
  %345 = vmatpush1.msra.mxu0 0.0
  %346 = vmatprep.subr.mxu0 0.0
  %347 = vmatpush1.msra.mxu0 0.0
  %348 = vmatprep.subr.mxu0 0.0
  %349 = vmatpush1.msra.mxu0 0.0
  %350 = vmatprep.subr.mxu0 0.0
  %351 = vmatpush1.msra.mxu0 0.0
  %352 = vmatprep.subr.mxu0 0.0
  %353 = vmatpush1.msra.mxu0 0.0
  %354 = vmatprep.subr.mxu0 0.0
  %355 = vmatpush1.msra.mxu0 0.0
  %356 = vmatprep.mubr.f32.mxu0 0.0
  %357 = vmatmul.mubr.f32.gmra.mrb[0].mxu0 %v287
  %v358 = vpop.f32.mrb[0].mxu0
  %v359 = vadd.f32 %v278, %v358
  %v360 = vpop.f32.mrb[0].mxu0
  %361 = vmatprep.mubr.f32.mxu0 0.0
  %362 = vmatmul.mubr.f32.gmra.mrb[0].mxu0 %v290
  %v363 = vpop.f32.mrb[0].mxu0
  %v364 = vadd.f32 %v283, %v363
  %v365 = vpop.f32.mrb[0].mxu0
  %366 = vdwg.mxu0
  %367 = vst [vmem:[%s7] sm:$0xff] %v359
  %368 = vst [vmem:[%s7 + $0x8] sm:$0x1] %v364
  // Predicated region
  $region30: #{nn_forward.1} parent=0 // pred_check
    _
  $region31: #{nn_forward.1} parent=0 // pred_check_branch
    %370 = sbr.rel (0) target = $region33
  $region32: #{nn_forward.1} parent=0 // pred_region
    _
  $region33: #{nn_forward.1} parent=0 // pred_fallthru
    _
  // Predicated region
  $region34: #{nn_forward.1} parent=0 // pred_check
    _
  $region35: #{nn_forward.1} parent=0 // pred_check_branch
    %372 = sbr.rel (0) target = $region37
  $region36: #{nn_forward.1} parent=0 // pred_region
    _
  $region37: #{nn_forward.1} parent=0 // pred_fallthru
    _

</llo_original>
